<compile_context>
chip_gen: v5e
topology: v5e:2x2
jax: 0.10.0
libtpu: 0.0.40
codegen_flags: <defaults>
</compile_context>

<pallas_src>
import functools

import jax
import jax.numpy as jnp
import numpy as np
from jax import lax
from jax.experimental import pallas as pl
from jax.experimental.pallas import tpu as pltpu

_EPS = 1e-7                      # max_dot_product = 1 - eps in rotationErrors
_MAX_ROTATION_ANGLE = 1.570796   # rotationLoss clamp_max
_MAX_TRANSLATION_ERROR = 1.0     # translationLoss clamp_max

_SUB = 8
_LANE = 128
_MAX_NT = 4096                   # lane-axis tile cap


def _round_up(x, m):
    return (x + m - 1) // m * m


# ----------------------------------------------------------------------------
# Pallas kernel: sum_{m,n} (1 - 2*C_gt[b]) * P[b] for every batch element
# ----------------------------------------------------------------------------
def _corr_sum_kernel(p_ref, c_ref, out_ref, acc_ref, *, M, N, TM, NT, binary_c):
    i = pl.program_id(1)          # M-tile index (reduction axis)
    j = pl.program_id(2)          # N-tile index (reduction axis)

    @pl.when(jnp.logical_and(i == 0, j == 0))
    def _():
        acc_ref[...] = jnp.zeros_like(acc_ref)

    p = p_ref[0].astype(jnp.float32)                     # (TM, NT)
    if binary_c:
        # 0/1 mask: signed select, no upcast of C, fewer VALU ops.
        signed = jnp.where(c_ref[0] != 0, -p, p)
    else:
        signed = (1.0 - 2.0 * c_ref[0].astype(jnp.float32)) * p

    # In-kernel ragged-edge masking (replaces wrapper-side jnp.pad).  Emitted
    # only when M / N are not tile-aligned; a handful of VPU selects per vreg,
    # negligible vs. the HBM stream.  Using select (not multiply) also makes
    # garbage bytes in the partial-block padding harmless.
    if M % TM:
        rows = lax.broadcasted_iota(jnp.int32, (TM, NT), 0)
        signed = jnp.where(i * TM + rows < M, signed, 0.0)
    if N % NT:
        cols = lax.broadcasted_iota(jnp.int32, (TM, NT), 1)
        signed = jnp.where(j * NT + cols < N, signed, 0.0)

    # Collapse the (TM, NT) tile to one (8, 128) block using only
    # layout-preserving vreg adds (sublane-group reshape + lane-chunk slices);
    # keeps the XLU off the per-step path and the accumulator vreg-sized.
    part = signed.reshape(TM // _SUB, _SUB, NT).sum(axis=0)     # (8, NT)
    blk = part[:, :_LANE]
    for q in range(1, NT // _LANE):
        blk = blk + part[:, q * _LANE:(q + 1) * _LANE]
    acc_ref[...] += blk                                          # (8, 128)

    @pl.when(jnp.logical_and(i == pl.num_programs(1) - 1,
                             j == pl.num_programs(2) - 1))
    def _():
        total = jnp.sum(acc_ref[...])            # single XLU reduce per batch
        # Lane-dense (1, 8, 128) output tile; wrapper reads element [b, 0, 0].
        out_ref[...] = jnp.full(out_ref.shape, total, dtype=jnp.float32)


def _correspondence_sums(P, C_gt):
    """Per-batch sum of (1 - 2*C_gt) * P, returned as shape (B,) float32."""
    B, M, N = P.shape
    assert C_gt.shape == (B, M, N)

    if C_gt.dtype == jnp.bool_:
        # Same byte width; avoids bool-ref lowering quirks in the kernel.
        C_gt = C_gt.astype(jnp.int8)
    binary_c = bool(jnp.issubdtype(C_gt.dtype, jnp.integer))

    # --- N tiling: lane padding bounded by 127 lanes -------------------------
    n_chunks = -(-N // _MAX_NT)
    NT = min(_round_up(-(-N // n_chunks), _LANE), _MAX_NT)

    # --- generation-aware tile / VMEM budgeting ------------------------------
    try:
        vmem_cap = pltpu.get_tpu_info().vmem_capacity_bytes
    except Exception:
        vmem_cap = 64 << 20                      # conservative fallback
    big_vmem = vmem_cap >= (96 << 20)            # v5e / v6e: 128 MiB; v7x: 64 MiB
    total_tile_budget = (32 << 20) if big_vmem else (16 << 20)

    per_elem_bytes = P.dtype.itemsize + C_gt.dtype.itemsize
    tm_budget = total_tile_budget // (2 * NT * per_elem_bytes)   # 2 = dbl-buffer
    TM = int(np.clip(tm_budget // _SUB * _SUB, _SUB, _round_up(M, _SUB)))

    grid = (B, pl.cdiv(M, TM), pl.cdiv(N, NT))

    need = (2 * TM * NT * per_elem_bytes      # double-buffered input tiles
            + 2 * TM * NT * 4                 # elementwise f32 temporaries
            + _SUB * _LANE * 4                # accumulator
            + 2 * _SUB * _LANE * 4)           # double-buffered output tile
    vmem_cap_limit = (80 << 20) if big_vmem else (40 << 20)
    vmem_limit = int(min(vmem_cap_limit, max(16 << 20, need + (4 << 20))))

    cost = pl.CostEstimate(
        flops=3 * B * M * N,
        transcendentals=0,
        bytes_accessed=B * M * N * per_elem_bytes + B * _SUB * _LANE * 4)

    kernel = functools.partial(_corr_sum_kernel, M=M, N=N, TM=TM, NT=NT,
                               binary_c=binary_c)

    out = pl.pallas_call(
        kernel,
        out_shape=jax.ShapeDtypeStruct((B, _SUB, _LANE), jnp.float32),
        grid_spec=pltpu.PrefetchScalarGridSpec(
            num_scalar_prefetch=0,
            grid=grid,
            in_specs=[pl.BlockSpec((1, TM, NT), lambda b, i, j: (b, i, j)),
                      pl.BlockSpec((1, TM, NT), lambda b, i, j: (b, i, j))],
            out_specs=pl.BlockSpec((1, _SUB, _LANE),
                                   lambda b, i, j: (b, 0, 0)),
            scratch_shapes=[pltpu.VMEM((_SUB, _LANE), jnp.float32)]),
        compiler_params=pltpu.CompilerParams(
            dimension_semantics=("parallel", "arbitrary", "arbitrary"),
            vmem_limit_bytes=vmem_limit),
        cost_estimate=cost,
    )(P, C_gt)
    return out[:, 0, 0]


# ----------------------------------------------------------------------------
# JAX glue: geo.angle_axis_to_rotation_matrix (Rodrigues, kornia-style)
# ----------------------------------------------------------------------------
def angle_axis_to_rotation_matrix(angle_axis, eps=1e-6):
    """(B, 3) angle-axis -> (B, 3, 3) rotation matrix (Rodrigues formula)."""
    theta2 = jnp.sum(angle_axis * angle_axis, axis=-1)              # (B,)
    theta = jnp.sqrt(jnp.maximum(theta2, 1e-32))
    wxyz = angle_axis / (theta[..., None] + eps)
    wx, wy, wz = wxyz[..., 0], wxyz[..., 1], wxyz[..., 2]
    c, s = jnp.cos(theta), jnp.sin(theta)
    oc = 1.0 - c
    r_full = jnp.stack([
        c + wx * wx * oc,       wx * wy * oc - wz * s,  wy * s + wx * wz * oc,
        wz * s + wx * wy * oc,  c + wy * wy * oc,       -wx * s + wy * wz * oc,
        -wy * s + wx * wz * oc, wx * s + wy * wz * oc,  c + wz * wz * oc,
    ], axis=-1).reshape(-1, 3, 3)
    rx, ry, rz = angle_axis[..., 0], angle_axis[..., 1], angle_axis[..., 2]
    ones = jnp.ones_like(rx)
    r_taylor = jnp.stack([ones, -rz, ry,
                          rz, ones, -rx,
                          -ry, rx, ones], axis=-1).reshape(-1, 3, 3)
    use_full = (theta2 > eps)[..., None, None]
    return jnp.where(use_full, r_full, r_taylor)


# ----------------------------------------------------------------------------
# Module equivalent
# ----------------------------------------------------------------------------
class TotalLossWithRep:
    def __init__(self, gamma):
        self.gamma = float(gamma)

    def __call__(self, theta, P, R_gt, t_gt, C_gt, p2d=None, p3d=None,
                 num_points_2d=None, num_points_3d=None):
        # p2d / p3d / num_points_* are unused in the PyTorch forward; accepted
        # here only to match the signature.
        corr = _correspondence_sums(P, C_gt)           # Pallas (HBM-heavy part)
        corr_loss = jnp.mean(corr)

        if self.gamma > 0.0:
            # Tiny (B,3,3)/(B,3) terms + arccos stay in plain-JAX glue.
            R = angle_axis_to_rotation_matrix(theta[..., :3].astype(jnp.float32))
            t = theta[..., 3:].astype(jnp.float32)
            dot = jnp.sum(R * R_gt.astype(jnp.float32), axis=(-2, -1))
            cosang = jnp.clip(0.5 * (dot - 1.0), -(1.0 - _EPS), 1.0 - _EPS)
            rot_loss = jnp.mean(jnp.minimum(jnp.arccos(cosang),
                                            _MAX_ROTATION_ANGLE))
            d = t - t_gt.astype(jnp.float32)
            # TODO(synk): forward-only; add eps under sqrt if a backward pass
            # through the translation norm is ever needed (grad undefined at 0).
            terr = jnp.minimum(jnp.sqrt(jnp.sum(d * d, axis=-1)),
                               _MAX_TRANSLATION_ERROR)
            trans_loss = jnp.mean(terr)
            losses = jnp.stack([corr_loss, rot_loss, trans_loss])
            loss = losses[0] + self.gamma * (losses[1] + losses[2])
        else:
            losses = corr_loss.reshape(1)
            loss = losses[0]
        return loss, losses


# ----------------------------------------------------------------------------
# Demo / correctness check
# ----------------------------------------------------------------------------
if __name__ == "__main__":
    key = jax.random.PRNGKey(0)
    B, M, N = 2, 12, 100          # deliberately non-(8,128)-aligned -> masked
    k = jax.random.split(key, 10)

    theta = 0.1 * jax.random.normal(k[0], (B, 6), jnp.float32)
    logits = jax.random.normal(k[1], (B, M, N), jnp.float32)
    P = jax.nn.softmax(logits.reshape(B, -1), axis=-1).reshape(B, M, N)
    aa_gt = 0.2 * jax.random.normal(k[2], (B, 3), jnp.float32)
    R_gt = angle_axis_to_rotation_matrix(aa_gt)
    t_gt = jax.random.normal(k[3], (B, 3), jnp.float32)
    C_mask = jax.random.uniform(k[4], (B, M, N)) < 0.1
    C_gt_f32 = C_mask.astype(jnp.float32)
    C_gt_i8 = C_mask.astype(jnp.int8)

    gamma = 0.5
    module = TotalLossWithRep(gamma=gamma)
    loss, losses = module(theta, P, R_gt, t_gt, C_gt_f32)
    jax.block_until_ready((loss, losses))

    # pure-JAX reference mirroring the PyTorch forward
    R_ref = angle_axis_to_rotation_matrix(theta[..., :3])
    t_ref_val = theta[..., 3:]
    corr_ref = jnp.mean(jnp.sum((1.0 - 2.0 * C_gt_f32) * P, axis=(-2, -1)))
    dot_ref = jnp.sum(R_ref * R_gt, axis=(-2, -1))
    ang_ref = jnp.arccos(jnp.clip(0.5 * (dot_ref - 1.0),
                                  -(1.0 - _EPS), 1.0 - _EPS))
    rot_ref = jnp.mean(jnp.minimum(ang_ref, _MAX_ROTATION_ANGLE))
    tr_ref = jnp.mean(jnp.minimum(jnp.linalg.norm(t_ref_val - t_gt, axis=-1),
                                  _MAX_TRANSLATION_ERROR))
    losses_ref = jnp.stack([corr_ref, rot_ref, tr_ref])
    loss_ref = losses_ref[0] + gamma * (losses_ref[1] + losses_ref[2])

    assert np.allclose(np.asarray(losses), np.asarray(losses_ref),
                       rtol=1e-5, atol=1e-5), (losses, losses_ref)
    assert np.allclose(np.asarray(loss), np.asarray(loss_ref),
                       rtol=1e-5, atol=1e-5), (loss, loss_ref)

    # binary-mask fast path (int8 C_gt) must match the float path
    loss_i8, losses_i8 = module(theta, P, R_gt, t_gt, C_gt_i8)
    jax.block_until_ready((loss_i8, losses_i8))
    assert np.allclose(np.asarray(losses_i8), np.asarray(losses_ref),
                       rtol=1e-5, atol=1e-5), (losses_i8, losses_ref)

    # gamma <= 0 path (correspondence loss only)
    loss0, losses0 = TotalLossWithRep(0.0)(theta, P, R_gt, t_gt, C_gt_f32)
    jax.block_until_ready((loss0, losses0))
    assert losses0.shape == (1,)
    assert np.allclose(np.asarray(loss0), np.asarray(corr_ref),
                       rtol=1e-5, atol=1e-5), (loss0, corr_ref)

    # multi-tile, ragged M and N: exercises accumulation across grid steps and
    # the in-kernel edge masking on both reduction axes.
    B2, M2, N2 = 2, 1040, 4500
    P2 = jax.random.uniform(k[5], (B2, M2, N2), jnp.float32)
    C2 = (jax.random.uniform(k[6], (B2, M2, N2)) < 0.1).astype(jnp.float32)
    corr2 = _correspondence_sums(P2, C2)
    jax.block_until_ready(corr2)
    corr2_ref = np.sum((1.0 - 2.0 * np.asarray(C2, np.float64))
                       * np.asarray(P2, np.float64), axis=(-2, -1))
    assert np.allclose(np.asarray(corr2, np.float64), corr2_ref,
                       rtol=1e-4, atol=1e-2), (corr2, corr2_ref)

    print("KERNEL_OK")
</pallas_src>

<mosaic_0001>
module attributes {stable_mosaic.version = 11 : i64} {
  func.func @_corr_sum_kernel(%arg0: i32, %arg1: i32, %arg2: i32, %arg3: memref<1x16x128xf32, #tpu.memory_space<vmem>>, %arg4: memref<1x16x128xf32, #tpu.memory_space<vmem>>, %arg5: memref<1x8x128xf32, #tpu.memory_space<vmem>>, %arg6: memref<8x128xf32, #tpu.memory_space<vmem>>) attributes {dimension_semantics = [#tpu.dimension_semantics<parallel>, #tpu.dimension_semantics<arbitrary>, #tpu.dimension_semantics<arbitrary>], iteration_bounds = array<i64: 2, 1, 1>, scalar_prefetch = 0 : i64, scratch_operands = 1 : i64, tpu.core_type = #tpu.core_type<tc>, window_params = [{transform_indices = @transform_0, window_bounds = array<i64: 1, 16, 128>}, {transform_indices = @transform_1, window_bounds = array<i64: 1, 16, 128>}, {transform_indices = @transform_2, window_bounds = array<i64: 1, 8, 128>}]} {
    %c0_i32 = arith.constant 0 : i32
    %0 = arith.cmpi eq, %arg1, %c0_i32 : i32
    %c0_i32_0 = arith.constant 0 : i32
    %1 = arith.cmpi eq, %arg2, %c0_i32_0 : i32
    %2 = arith.andi %0, %1 : i1
    %3 = arith.extui %2 : i1 to i32
    %c0_i32_1 = arith.constant 0 : i32
    %4 = arith.cmpi ne, %3, %c0_i32_1 : i32
    scf.if %4 {
      %cst_18 = arith.constant 0.000000e+00 : f32
      %40 = vector.broadcast %cst_18 : f32 to vector<8x128xf32>
      %c0_19 = arith.constant 0 : index
      %c0_20 = arith.constant 0 : index
      %41 = vector.load %arg6[%c0_19, %c0_20] : memref<8x128xf32, #tpu.memory_space<vmem>>, vector<8x128xf32>
      tpu.vector_store %arg6[%c0_19, %c0_20], %40 {strides = array<i32>} : memref<8x128xf32, #tpu.memory_space<vmem>>, vector<8x128xf32>,
    } else {
    }
    %c0 = arith.constant 0 : index
    %c0_2 = arith.constant 0 : index
    %c0_3 = arith.constant 0 : index
    %5 = vector.load %arg3[%c0, %c0_2, %c0_3] : memref<1x16x128xf32, #tpu.memory_space<vmem>>, vector<1x16x128xf32>
    %6 = vector.shape_cast %5 : vector<1x16x128xf32> to vector<16x128xf32>
    %c0_4 = arith.constant 0 : index
    %c0_5 = arith.constant 0 : index
    %c0_6 = arith.constant 0 : index
    %7 = vector.load %arg4[%c0_4, %c0_5, %c0_6] : memref<1x16x128xf32, #tpu.memory_space<vmem>>, vector<1x16x128xf32>
    %8 = vector.shape_cast %7 : vector<1x16x128xf32> to vector<16x128xf32>
    %cst = arith.constant 2.000000e+00 : f32
    %9 = vector.broadcast %cst : f32 to vector<16x128xf32>
    %10 = arith.mulf %9, %8 : vector<16x128xf32>
    %cst_7 = arith.constant 1.000000e+00 : f32
    %11 = vector.broadcast %cst_7 : f32 to vector<16x128xf32>
    %12 = arith.subf %11, %10 : vector<16x128xf32>
    %13 = arith.mulf %12, %6 : vector<16x128xf32>
    %14 = tpu.iota {dimensions = array<i32: 0>} : vector<16x128xi32>
    %c16_i32 = arith.constant 16 : i32
    %15 = arith.muli %arg1, %c16_i32 : i32
    %16 = vector.broadcast %15 : i32 to vector<16x128xi32>
    %17 = arith.addi %16, %14 : vector<16x128xi32>
    %c12_i32 = arith.constant 12 : i32
    %18 = vector.broadcast %c12_i32 : i32 to vector<16x128xi32>
    %19 = arith.cmpi slt, %17, %18 : vector<16x128xi32>
    %cst_8 = arith.constant 0.000000e+00 : f32
    %20 = vector.broadcast %cst_8 : f32 to vector<16x128xf32>
    %21 = arith.select %19, %13, %20 : vector<16x128xi1>, vector<16x128xf32>
    %22 = tpu.iota {dimensions = array<i32: 1>} : vector<16x128xi32>
    %c128_i32 = arith.constant 128 : i32
    %23 = arith.muli %arg2, %c128_i32 : i32
    %24 = vector.broadcast %23 : i32 to vector<16x128xi32>
    %25 = arith.addi %24, %22 : vector<16x128xi32>
    %c100_i32 = arith.constant 100 : i32
    %26 = vector.broadcast %c100_i32 : i32 to vector<16x128xi32>
    %27 = arith.cmpi slt, %25, %26 : vector<16x128xi32>
    %cst_9 = arith.constant 0.000000e+00 : f32
    %28 = vector.broadcast %cst_9 : f32 to vector<16x128xf32>
    %29 = arith.select %27, %21, %28 : vector<16x128xi1>, vector<16x128xf32>
    %30 = vector.shape_cast %29 : vector<16x128xf32> to vector<2x8x128xf32>
    %cst_10 = arith.constant dense<0.000000e+00> : vector<8x128xf32>
    %31 = vector.multi_reduction <add>, %30, %cst_10 [0] : vector<2x8x128xf32> to vector<8x128xf32>
    %c0_11 = arith.constant 0 : index
    %c0_12 = arith.constant 0 : index
    %32 = vector.load %arg6[%c0_11, %c0_12] : memref<8x128xf32, #tpu.memory_space<vmem>>, vector<8x128xf32>
    %33 = arith.addf %32, %31 : vector<8x128xf32>
    %c0_13 = arith.constant 0 : index
    %c0_14 = arith.constant 0 : index
    %34 = vector.load %arg6[%c0_13, %c0_14] : memref<8x128xf32, #tpu.memory_space<vmem>>, vector<8x128xf32>
    tpu.vector_store %arg6[%c0_13, %c0_14], %33 {strides = array<i32>} : memref<8x128xf32, #tpu.memory_space<vmem>>, vector<8x128xf32>,
    %c0_i32_15 = arith.constant 0 : i32
    %35 = arith.cmpi eq, %arg1, %c0_i32_15 : i32
    %c0_i32_16 = arith.constant 0 : i32
    %36 = arith.cmpi eq, %arg2, %c0_i32_16 : i32
    %37 = arith.andi %35, %36 : i1
    %38 = arith.extui %37 : i1 to i32
    %c0_i32_17 = arith.constant 0 : i32
    %39 = arith.cmpi ne, %38, %c0_i32_17 : i32
    scf.if %39 {
      %c0_18 = arith.constant 0 : index
      %c0_19 = arith.constant 0 : index
      %40 = vector.load %arg6[%c0_18, %c0_19] : memref<8x128xf32, #tpu.memory_space<vmem>>, vector<8x128xf32>
      %41 = vector.shape_cast %40 : vector<8x128xf32> to vector<1x8x128xf32>
      %cst_20 = arith.constant dense<0.000000e+00> : vector<1xf32>
      %42 = vector.multi_reduction <add>, %41, %cst_20 [1, 2] : vector<1x8x128xf32> to vector<1xf32>
      %43 = vector.shape_cast %42 : vector<1xf32> to vector<1x1x1xf32>
      %44 = vector.extract %43[0, 0, 0] : f32 from vector<1x1x1xf32>
      %45 = vector.broadcast %44 : f32 to vector<1x8x128xf32>
      %c0_21 = arith.constant 0 : index
      %c0_22 = arith.constant 0 : index
      %c0_23 = arith.constant 0 : index
      %46 = vector.load %arg5[%c0_21, %c0_22, %c0_23] : memref<1x8x128xf32, #tpu.memory_space<vmem>>, vector<1x8x128xf32>
      tpu.vector_store %arg5[%c0_21, %c0_22, %c0_23], %45 {strides = array<i32>} : memref<1x8x128xf32, #tpu.memory_space<vmem>>, vector<1x8x128xf32>,
    } else {
    }
    return
  }
  func.func @transform_0(%arg0: i32, %arg1: i32, %arg2: i32) -> (i32, i32, i32) {
    %c0_i32 = arith.constant 0 : i32
    return %arg0, %arg1, %arg2 : i32, i32, i32
  }
  func.func @transform_1(%arg0: i32, %arg1: i32, %arg2: i32) -> (i32, i32, i32) {
    %c0_i32 = arith.constant 0 : i32
    return %arg0, %arg1, %arg2 : i32, i32, i32
  }
  func.func @transform_2(%arg0: i32, %arg1: i32, %arg2: i32) -> (i32, i32, i32) {
    %c0_i32 = arith.constant 0 : i32
    %c0_i32_0 = arith.constant 0 : i32
    %c0_i32_1 = arith.constant 0 : i32
    return %arg0, %c0_i32, %c0_i32_0 : i32, i32, i32
  }
}

</mosaic_0001>

<llo_original>
// kernel: tpu_custom_call.1
$region0: #{tpu_custom_call.1}
  #allocation0 [shape = 'u32[]', space=smem, size = 0x4, offset = 0x4, fixed_abs, tag = 'smem constant byte address 0x4 - core index']
  #allocation1 [shape = 'u32[72,128]{1,0:T(1,128)}', space=vmem, size = 0x9000, scoped, tag = 'internal scratch']
  #allocation2 [shape = 'f32[8,128]{1,0:T(8,128)}', space=vmem, size = 0x1000, scoped, tag = 'scratch operand']
  %s0 = inlined_call_operand.vmem [shape: f32[2,12,100], index: 0, kind: input, shape index: {}]
  %s1 = inlined_call_operand.vmem [shape: f32[2,12,100], index: 1, kind: input, shape index: {}]
  %s2 = inlined_call_operand.hbm [shape: f32[2,8,128], index: 2, kind: output, shape index: {}]
  %s3 = sld [smem:[#allocation0]]
  $region49: #{tpu_custom_call.1} parent=0
    _
  %s5 = ssub.s32 1, %s3
  %s6 = scalar_select 0, %s5, %s3
  $region1: #{tpu_custom_call.1} parent=0
    #allocation3 [shape = 'u8[8192]{0}', space=vmem, size = 0x2000, scoped, tag = 'output window, operand 0']
    #allocation4 [shape = 's32[2]{0}', space=sflag, size = 0x8, scoped, tag = 'scoped memory for tpu_custom_call.1']
    %7 = vsyncpa [#allocation4], 0
    %s8 = scalar_lea.sflag [#allocation4], 1
    %9 = vsyncpa %s8, 0
    loop: start=0, step=1, limit=4
    $region2: #{tpu_custom_call.1} parent=1 // loop_pre_header
      _
    $region3: #{tpu_custom_call.1} parent=1 // loop_header
      %s11 = sphi 0, %s15
      %p12 = scmp.ge.s32.totalorder %s11, 4
      %s18 = sphi 0, %s37
      %s19 = sphi 0, %s33
      %s20 = sphi 0, %s29
      %s21 = sphi 0, %s18
      %s22 = sphi 0, %s19
      %s23 = sphi 0, %s20
      %s24 = sphi 0, %s21
      %s25 = sphi 0, %s22
      %s26 = sphi 0, %s23
      %s44 = sphi 0, %s46
      %s47 = sphi 0, %s44
      %s48 = sphi 0, %s47
      %s64 = sphi 0, %s48
      %s74 = sphi 0, %s76
      %s77 = sphi 0, %s74
      %s78 = sphi 0, %s77
      %s94 = sphi 0, %s78
      %s100 = sphi 0, %s102
      %s103 = sphi 0, %s100
      %s104 = sphi 0, %s103
      %s120 = sphi 0, %s104
    $region4: #{tpu_custom_call.1} parent=1 // loop_header_branch
      %14 = sbr.rel (%p12) target = $region8
    $region5: #{tpu_custom_call.1} parent=1 // loop_body
      %s16 = ssub.s32 %s11, 1
      %s17 = ssub.s32 %s11, 2
      %s27 = sadd.s32 1, %s20
      %p28 = scmp.ge.s32.totalorder %s27, 1
      %s29 = scalar_select %p28, 0, %s27
      %s30 = sadd.s32 1, %s19
      %s31 = scalar_select %p28, %s30, %s19
      %p32 = scmp.ge.s32.totalorder %s31, 1
      %s33 = scalar_select %p32, 0, %s31
      %s34 = sadd.s32 1, %s18
      %s35 = scalar_select %p32, %s34, %s18
      %p36 = scmp.ge.s32.totalorder %s35, 2
      %s37 = scalar_select %p36, 0, %s35
      %s38 = ssub.s32 %s18, %s37
      %s39 = ssub.s32 %s19, %s33
      %s40 = sor.u32 %s38, %s39
      %s41 = ssub.s32 %s20, %s29
      %s42 = sor.u32 %s40, %s41
      %p43 = scmp.eq.s32.totalorder %s42, 0
      %s45 = sadd.s32 %s44, 1
      %s46 = scalar_select %p43, %s44, %s45
      %p49 = pneg %p43
      %p50 = scmp.eq.s32.totalorder %s11, 1
      %p51 = por %p49, %p50
      %p52 = scmp.ne.s32.totalorder %s44, %s47
      %p53 = scmp.eq.s32.totalorder %s11, 0
      %p54 = por %p52, %p53
      %p55 = scmp.ne.s32.totalorder %s44, %s47
      %p56 = scmp.eq.s32.totalorder %s16, 1
      %p57 = por %p55, %p56
      %p58 = scmp.ne.s32.totalorder %s47, %s48
      %p59 = scmp.eq.s32.totalorder %s16, 0
      %p60 = por %p58, %p59
      %p61 = scmp.ne.s32.totalorder %s47, %s48
      %p62 = scmp.eq.s32.totalorder %s17, 1
      %p63 = por %p61, %p62
      %p65 = scmp.ne.s32.totalorder %s48, %s64
      %p66 = scmp.eq.s32.totalorder %s17, 0
      %p67 = por %p65, %p66
      %s68 = ssub.s32 %s18, %s37
      %s69 = ssub.s32 %s19, %s33
      %s70 = sor.u32 %s68, %s69
      %s71 = ssub.s32 %s20, %s29
      %s72 = sor.u32 %s70, %s71
      %p73 = scmp.eq.s32.totalorder %s72, 0
      %s75 = sadd.s32 %s74, 1
      %s76 = scalar_select %p73, %s74, %s75
      %p79 = pneg %p73
      %p80 = scmp.eq.s32.totalorder %s11, 1
      %p81 = por %p79, %p80
      %p82 = scmp.ne.s32.totalorder %s74, %s77
      %p83 = scmp.eq.s32.totalorder %s11, 0
      %p84 = por %p82, %p83
      %p85 = scmp.ne.s32.totalorder %s74, %s77
      %p86 = scmp.eq.s32.totalorder %s16, 1
      %p87 = por %p85, %p86
      %p88 = scmp.ne.s32.totalorder %s77, %s78
      %p89 = scmp.eq.s32.totalorder %s16, 0
      %p90 = por %p88, %p89
      %p91 = scmp.ne.s32.totalorder %s77, %s78
      %p92 = scmp.eq.s32.totalorder %s17, 1
      %p93 = por %p91, %p92
      %p95 = scmp.ne.s32.totalorder %s78, %s94
      %p96 = scmp.eq.s32.totalorder %s17, 0
      %p97 = por %p95, %p96
      %s98 = ssub.s32 %s18, %s37
      %p99 = scmp.eq.s32.totalorder %s98, 0
      %s101 = sadd.s32 %s100, 1
      %s102 = scalar_select %p99, %s100, %s101
      %p105 = pneg %p99
      %p106 = scmp.eq.s32.totalorder %s11, 1
      %p107 = por %p105, %p106
      %p108 = scmp.ne.s32.totalorder %s100, %s103
      %p109 = scmp.eq.s32.totalorder %s11, 0
      %p110 = por %p108, %p109
      %p111 = scmp.ne.s32.totalorder %s100, %s103
      %p112 = scmp.eq.s32.totalorder %s16, 1
      %p113 = por %p111, %p112
      %p114 = scmp.ne.s32.totalorder %s103, %s104
      %p115 = scmp.eq.s32.totalorder %s16, 0
      %p116 = por %p114, %p115
      %p117 = scmp.ne.s32.totalorder %s103, %s104
      %p118 = scmp.eq.s32.totalorder %s17, 1
      %p119 = por %p117, %p118
      %p121 = scmp.ne.s32.totalorder %s104, %s120
      %p122 = scmp.eq.s32.totalorder %s17, 0
      %p123 = por %p121, %p122
      %p124 = scmp.le.s32.totalorder 1, %s11
      %p125 = scmp.lt.s32.totalorder %s11, 3
      %p126 = pnand %p124, %p125
      %p127 = pneg %p126
      // Predicated region
      $region9: #{tpu_custom_call.1} parent=5 // pred_check
        _
      $region10: #{tpu_custom_call.1} parent=5 // pred_check_branch
        %129 = sbr.rel (%p126) target = $region12
      $region11: #{tpu_custom_call.1} parent=5 // pred_region
        %s130 = ssub.s32 %s11, 1
      $region12: #{tpu_custom_call.1} parent=5 // pred_fallthru
        _
      %p131 = scmp.lt.s32.totalorder %s11, 2
      // Predicated region
      $region13: #{tpu_custom_call.1} parent=5 // pred_check
        %p132 = pneg %p131
      $region14: #{tpu_custom_call.1} parent=5 // pred_check_branch
        %134 = sbr.rel (%p132) target = $region16
      $region15: #{tpu_custom_call.1} parent=5 // pred_region
        // Predicated region
        $region17: #{tpu_custom_call.1} parent=15 // pred_check
          %p135 = pneg %p54
        $region18: #{tpu_custom_call.1} parent=15 // pred_check_branch
          %137 = sbr.rel (%p135) target = $region20
        $region19: #{tpu_custom_call.1} parent=15 // pred_region
          %s138 = smul.u32 2, %s19
          %p139 = scmp.lt.s32.totalorder %s18, 1
          %s140 = scalar_select %p139, %s18, 1
          %p141 = scmp.lt.s32.totalorder %s138, 1
          %s142 = scalar_select %p141, %s138, 1
          %p143 = scmp.lt.s32.totalorder %s20, 0
          %s144 = scalar_select %p143, %s20, 0
          %s145 = sadd.s32 %s144, %s142
          %s146 = smul.addr %s140, 2
          %s147 = sadd.s32 %s145, %s146
          %s148 = smul.addr %s147, 8
          %s149 = scalar_lea.vmem %s0, %s148
          %s150 = smul.u32 2, %s19
        $region20: #{tpu_custom_call.1} parent=15 // pred_fallthru
          _
        // Predicated region
        $region21: #{tpu_custom_call.1} parent=15 // pred_check
          %p151 = pneg %p84
        $region22: #{tpu_custom_call.1} parent=15 // pred_check_branch
          %153 = sbr.rel (%p151) target = $region24
        $region23: #{tpu_custom_call.1} parent=15 // pred_region
          %s154 = smul.u32 2, %s19
          %p155 = scmp.lt.s32.totalorder %s18, 1
          %s156 = scalar_select %p155, %s18, 1
          %p157 = scmp.lt.s32.totalorder %s154, 1
          %s158 = scalar_select %p157, %s154, 1
          %p159 = scmp.lt.s32.totalorder %s20, 0
          %s160 = scalar_select %p159, %s20, 0
          %s161 = sadd.s32 %s160, %s158
          %s162 = smul.addr %s156, 2
          %s163 = sadd.s32 %s161, %s162
          %s164 = smul.addr %s163, 8
          %s165 = scalar_lea.vmem %s1, %s164
          %s166 = smul.u32 2, %s19
        $region24: #{tpu_custom_call.1} parent=15 // pred_fallthru
          _
      $region16: #{tpu_custom_call.1} parent=5 // pred_fallthru
        _
      %p167 = scmp.le.s32.totalorder 1, %s11
      %p168 = scmp.lt.s32.totalorder %s11, 3
      %p169 = pnand %p167, %p168
      %p170 = pneg %p169
      // Predicated region
      $region25: #{tpu_custom_call.1} parent=5 // pred_check
        _
      $region26: #{tpu_custom_call.1} parent=5 // pred_check_branch
        %172 = sbr.rel (%p169) target = $region28
      $region27: #{tpu_custom_call.1} parent=5 // pred_region
        %s173 = ssub.s32 %s11, 1
        %s174 = smul.u32 2, %s22
        %p175 = scmp.lt.s32.totalorder %s21, 1
        %s176 = scalar_select %p175, %s21, 1
        %p177 = scmp.lt.s32.totalorder %s174, 1
        %s178 = scalar_select %p177, %s174, 1
        %p179 = scmp.lt.s32.totalorder %s23, 0
        %s180 = scalar_select %p179, %s23, 0
        %s181 = sadd.s32 %s180, %s178
        %s182 = smul.addr %s176, 2
        %s183 = sadd.s32 %s181, %s182
        %s184 = smul.addr %s183, 8
        %s185 = scalar_lea.vmem %s0, %s184
        %p186 = pneg %p60
        %p187 = pneg %p57
        %s188 = smul.u32 2, %s22
        %p189 = scmp.lt.s32.totalorder %s21, 1
        %s190 = scalar_select %p189, %s21, 1
        %p191 = scmp.lt.s32.totalorder %s188, 1
        %s192 = scalar_select %p191, %s188, 1
        %p193 = scmp.lt.s32.totalorder %s23, 0
        %s194 = scalar_select %p193, %s23, 0
        %s195 = sadd.s32 %s194, %s192
        %s196 = smul.addr %s190, 2
        %s197 = sadd.s32 %s195, %s196
        %s198 = smul.addr %s197, 8
        %s199 = scalar_lea.vmem %s1, %s198
        %p200 = pneg %p90
        %p201 = pneg %p87
        %p202 = pneg %p116
        %p203 = pneg %p113
        %s204 = sand.u32 %s103, 1
        %s205 = scalar_lea.sflag [#allocation4], %s204
        %s206 = sand.u32 %s103, 1
        %s207 = smul.addr %s206, 8
        %s208 = scalar_lea.vmem [#allocation3], %s207
        %s209 = smul.u32 2, %s22
        %p210 = scmp.lt.s32.totalorder %s21, 1
        %s211 = scalar_select %p210, %s21, 1
        %p212 = scmp.lt.s32.totalorder %s209, 1
        %s213 = scalar_select %p212, %s209, 1
        %p214 = scmp.lt.s32.totalorder %s23, 0
        %s215 = scalar_select %p214, %s23, 0
        %s216 = sadd.s32 %s215, %s213
        %s217 = smul.addr %s211, 2
        %s218 = sadd.s32 %s216, %s217
        %s219 = smul.addr %s218, 8
        %s220 = scalar_lea.vmem %s0, %s219
        %s221 = smul.u32 2, %s22
        %s222 = smul.u32 2, %s22
        %p223 = scmp.lt.s32.totalorder %s21, 1
        %s224 = scalar_select %p223, %s21, 1
        %p225 = scmp.lt.s32.totalorder %s222, 1
        %s226 = scalar_select %p225, %s222, 1
        %p227 = scmp.lt.s32.totalorder %s23, 0
        %s228 = scalar_select %p227, %s23, 0
        %s229 = sadd.s32 %s228, %s226
        %s230 = smul.addr %s224, 2
        %s231 = sadd.s32 %s229, %s230
        %s232 = smul.addr %s231, 8
        %s233 = scalar_lea.vmem %s1, %s232
        %s234 = smul.u32 2, %s22
        %p235 = scmp.eq.s32.totalorder %s22, 0
        %p236 = scmp.eq.s32.totalorder %s23, 0
        %p237 = pnand %p235, %p236
        %p238 = pneg %p237
        // Predicated region
        $region29: #{tpu_custom_call.1} parent=27 // pred_check
          _
        $region30: #{tpu_custom_call.1} parent=27 // pred_check_branch
          %240 = sbr.rel (%p237) target = $region32
        $region31: #{tpu_custom_call.1} parent=27 // pred_region
          %241 = vst [vmem:[#allocation2] sm:$0xff] 0.0
        $region32: #{tpu_custom_call.1} parent=27 // pred_fallthru
          _
        %v242 = vld [vmem:[%s220] sm:$0xff]
        %v243 = vld [vmem:[%s220 + $0x8] sm:$0xff]
        %v244 = vld [vmem:[%s233] sm:$0xff]
        %v245 = vld [vmem:[%s233 + $0x8] sm:$0xff]
        %v246 = vmul.f32 %v244, 2.0
        %v247 = vmul.f32 %v245, 2.0
        %v248 = vsub.f32 1.0, %v246
        %v249 = vsub.f32 1.0, %v247
        %v250 = vmul.f32 %v248, %v242
        %v251 = vmul.f32 %v249, %v243
        %v252 = vlaneseq
        %v253 = vshrl.u32 %v252, 7
        %v254 = vadd.s32 %v253, 8
        %s255 = smul.u32 %s22, 16
        %v256 = vstv %s255
        %v257 = vadd.s32 %v256, %v253
        %v258 = vadd.s32 %v256, %v254
        %vm259 = vcmp.lt.s32.totalorder %v257, 12
        %vm260 = vcmp.lt.s32.totalorder %v258, 12
        %v261 = vsel %vm259, %v250, 0.0
        %v262 = vsel %vm260, %v251, 0.0
        %v263 = vlaneseq
        %v264 = vand.u32 %v263, 127
        %s265 = smul.u32 %s23, 128
        %v266 = vstv %s265
        %v267 = vadd.s32 %v266, %v264
        %vm268 = vcmp.lt.s32.totalorder %v267, 100
        %v269 = vsel %vm268, %v261, 0.0
        %v270 = vsel %vm268, %v262, 0.0
        %v271 = vadd.f32 %v269, %v270
        %v272 = vld [vmem:[#allocation2] sm:$0xff]
        %v273 = vadd.f32 %v272, %v271
        %274 = vst [vmem:[#allocation2] sm:$0xff] %v273
        // Predicated region
        $region33: #{tpu_custom_call.1} parent=27 // pred_check
          _
        $region34: #{tpu_custom_call.1} parent=27 // pred_check_branch
          %276 = sbr.rel (%p237) target = $region36
        $region35: #{tpu_custom_call.1} parent=27 // pred_region
          %v277 = vld [vmem:[#allocation2] sm:$0xff]
          %278 = vadd.xlane.f32.xlu0 %v277
          %v279 = vpop.xlane.xlu0 %278
          %v280 = vrot.slane %v279, 4
          %v281 = vadd.f32 %v279, %v280
          %v282 = vrot.slane %v281, 2
          %v283 = vadd.f32 %v281, %v282
          %v284 = vrot.slane %v283, 1
          %v285 = vadd.f32 %v283, %v284
          %s286 = vtos %v285
          %v287 = vstv %s286
          %288 = vst [vmem:[%s208] sm:$0xff] %v287
        $region36: #{tpu_custom_call.1} parent=27 // pred_fallthru
          _
        %s289 = sand.u32 %s103, 1
        %s290 = scalar_lea.sflag [#allocation4], %s289
        %s291 = sand.u32 %s103, 1
        %s292 = smul.addr %s291, 8
        %s293 = scalar_lea.vmem [#allocation3], %s292
        // Predicated region
        $region37: #{tpu_custom_call.1} parent=27 // pred_check
          %p294 = pneg %p113
        $region38: #{tpu_custom_call.1} parent=27 // pred_check_branch
          %296 = sbr.rel (%p294) target = $region40
        $region39: #{tpu_custom_call.1} parent=27 // pred_region
          %298 = vsyncadd %s290, 0
          %s299 = smul.addr %s21, 8
          %s300 = scalar_lea.hbm %s2, %s299
          %s302 = sshll.u32 %s293, 4
          %s303 = int_to_ptr.vmem [resolvable:$true] %s302
          %s304 = sshll.u32 %s300, 4
          %s305 = int_to_ptr.hbm [resolvable:$true] %s304
          %307 = dma.vmem_to_hbm [thread:$0]  %s303, 128, %s305, %s290
        $region40: #{tpu_custom_call.1} parent=27 // pred_fallthru
          _
      $region28: #{tpu_custom_call.1} parent=5 // pred_fallthru
        _
      %p308 = scmp.le.s32.totalorder 2, %s11
      // Predicated region
      $region41: #{tpu_custom_call.1} parent=5 // pred_check
        %p309 = pneg %p308
      $region42: #{tpu_custom_call.1} parent=5 // pred_check_branch
        %311 = sbr.rel (%p309) target = $region44
      $region43: #{tpu_custom_call.1} parent=5 // pred_region
        %s312 = ssub.s32 %s11, 2
        // Predicated region
        $region45: #{tpu_custom_call.1} parent=43 // pred_check
          %p313 = pneg %p119
        $region46: #{tpu_custom_call.1} parent=43 // pred_check_branch
          %315 = sbr.rel (%p313) target = $region48
        $region47: #{tpu_custom_call.1} parent=43 // pred_region
          %s316 = sand.u32 %s104, 1
          %s317 = scalar_lea.sflag [#allocation4], %s316
          %s318 = sand.u32 %s104, 1
          %s319 = smul.addr %s318, 8
          %s320 = scalar_lea.vmem [#allocation3], %s319
          %322 = dma.done %s317, 128
        $region48: #{tpu_custom_call.1} parent=43 // pred_fallthru
          _
      $region44: #{tpu_custom_call.1} parent=5 // pred_fallthru
        _
    $region6: #{tpu_custom_call.1} parent=1 // loop_footer
      %s15 = sadd.s32 1, %s11
    $region7: #{tpu_custom_call.1} parent=1 // loop_footer_branch
      %10 = sbr.rel target = $region3
    $region8: #{tpu_custom_call.1} parent=1 // loop_exit
      _
    %323 = vsyncpa [#allocation4], 1
    %s324 = scalar_lea.sflag [#allocation4], 1
    %325 = vsyncpa %s324, 1

</llo_original>
